<compile_context>
chip_gen: v6e
topology: v6e:2x2x1
jax: 0.10.0
libtpu: 0.0.40
codegen_flags: <defaults>
</compile_context>

<pallas_src>
from functools import partial

import numpy as np
import jax
import jax.numpy as jnp
from jax import lax
from jax.experimental import pallas as pl
from jax.experimental.pallas import tpu as pltpu

_LANE = 128
_SUB = 8


def _tile_budget_bytes():
    """Per-input-tile byte budget, chosen per TPU generation."""
    try:
        kind = jax.devices()[0].device_kind.lower()
    except Exception:
        kind = ""
    if "v7" in kind or "7x" in kind:
        return 8 << 20    # 64 MiB physical VMEM -> ~32 MiB of double-buffered inputs
    if "v6" in kind:
        return 6 << 20    # ~24 MiB of inputs, fits comfortably
    if "v5 lite" in kind or "v5e" in kind:
        return 3 << 20    # ~12 MiB of inputs
    return 4 << 20        # v4 / v5p / unknown: conservative


def _psnr_sse_kernel(pred_ref, tgt_ref, out_ref, *, bs, rt, strip, kc, rows_valid):
    """Accumulate per-sample sums of squared differences.

    pred_ref / tgt_ref : (bs, rt, 128) VMEM tiles in the native input dtype.
    out_ref            : (bs, 8, 128) f32 partial sums, resident across the
                         chunk axis (same output block for every k).
    rows_valid         : if not None, rows with global row index >= rows_valid
                         are out-of-bounds block padding and are masked out.
    """
    s = pl.program_id(1)
    k = pl.program_id(2)

    @pl.when(k == 0)
    def _():
        out_ref[...] = jnp.zeros_like(out_ref)

    def do_strip(i):
        r0 = i * strip
        if not isinstance(r0, int):
            r0 = pl.multiple_of(r0, strip)
        p = pred_ref[:, pl.ds(r0, strip), :].astype(jnp.float32)
        t = tgt_ref[:, pl.ds(r0, strip), :].astype(jnp.float32)
        d = p - t
        sq = d * d
        if rows_valid is not None:
            # Mask rows past the end of the (possibly partial) last block.
            row = (s * kc + k) * rt + r0 + lax.broadcasted_iota(
                jnp.int32, (1, strip, _LANE), 1)
            sq = jnp.where(row < rows_valid, sq, 0.0)
        # Reduce the strip to one (8,128) slab per sample with pure VPU adds.
        out_ref[...] += sq.reshape(bs, strip // _SUB, _SUB, _LANE).sum(axis=1)

    n_strips = rt // strip
    if n_strips == 1:
        do_strip(0)
    else:
        def body(i, carry):
            do_strip(i)
            return carry
        lax.fori_loop(0, n_strips, body, 0, unroll=2)


def psnr_loss(pred, target, loss_weight=1.0, reduction='mean', toY=False,
              _force_max_rows=None):
    """Matches PSNRLoss.forward: loss_weight * (10/ln10) * mean_n(log(MSE_n + 1e-8))."""
    assert reduction == 'mean'
    assert pred.ndim == 4 and target.ndim == 4

    scale = 10.0 / np.log(10.0)

    if toY:
        # TODO(synk): fuse the RGB->Y conversion into the Pallas kernel to avoid
        # the HBM round trip of the full-size f32 Y images (JAX glue for now).
        coef = jnp.array([65.481, 128.553, 24.966], dtype=jnp.float32).reshape(1, 3, 1, 1)
        pred = ((pred.astype(jnp.float32) * coef).sum(axis=1, keepdims=True) + 16.0) / 255.0
        target = ((target.astype(jnp.float32) * coef).sum(axis=1, keepdims=True) + 16.0) / 255.0

    N, C, H, W = pred.shape
    D = C * H * W
    itemsize = jnp.dtype(pred.dtype).itemsize

    # --- lane/sublane-dense per-sample layout: (N, R_pad, 128) ---------------
    # Pad only to the next multiple of 8*128 = 1024 elements (free reshape, no
    # copy, in the common aligned case).  Any further block-boundary mismatch
    # is handled by the in-kernel row mask instead of a host-side jnp.pad.
    blk_elems = _SUB * _LANE
    R_pad = pl.cdiv(D, blk_elems) * _SUB        # rows of 128 lanes, multiple of 8
    D_pad = R_pad * _LANE

    def to_rows(x):
        x2 = x.reshape(N, D)
        if D_pad != D:
            # Both inputs padded with identical zeros -> zero diff -> no
            # contribution; we divide by the true D afterwards.
            x2 = jnp.pad(x2, ((0, 0), (0, D_pad - D)))
        return x2.reshape(N, R_pad, _LANE)

    p3 = to_rows(pred)
    t3 = to_rows(target)

    # --- tiling ---------------------------------------------------------------
    budget = _tile_budget_bytes()
    max_rows = max(_SUB, (budget // (_LANE * itemsize)) // _SUB * _SUB)
    if _force_max_rows is not None:                      # test hook
        max_rows = max(_SUB, (_force_max_rows // _SUB) * _SUB)

    if R_pad <= max_rows:
        # Small samples: fold the batch into the tile so each grid step still
        # moves a large DMA.  One grid step covers `bs` whole samples.
        bs = int(min(N, max(1, max_rows // R_pad), 256))
        rt, S, KC = R_pad, 1, 1
    else:
        # Large samples: one sample per batch step, chunked along the rows.
        bs = 1
        rt = (max_rows // 512) * 512 if max_rows >= 512 else max_rows
        n_chunks = pl.cdiv(R_pad, rt)
        # Split the chunk range in two when there is no batch parallelism so
        # both TensorCores on dual-core chips (v7x) have work.
        S = 2 if (N == 1 and n_chunks >= 2) else 1
        KC = pl.cdiv(n_chunks, S)

    rows_valid = R_pad if (S * KC * rt != R_pad) else None

    # Inner accumulation strips: a multiple of 8 that divides rt, sized so each
    # strip touches ~<=1024 rows (bounded live ranges at multi-MiB tiles).
    max_strip = max(_SUB, 1024 // bs)
    strip = _SUB
    for cand in (512, 256, 128, 64, 32, 16, 8):
        if cand <= max_strip and rt % cand == 0:
            strip = cand
            break

    NB = pl.cdiv(N, bs)
    last_block = pl.cdiv(R_pad, rt) - 1

    def in_map(i, s, k):
        # Clamp so a (fully masked) overhanging chunk never indexes past the
        # last block of the array.
        return (i, jnp.minimum(s * KC + k, last_block), 0)

    kernel = partial(_psnr_sse_kernel, bs=bs, rt=rt, strip=strip, kc=KC,
                     rows_valid=rows_valid)

    tile_bytes = bs * rt * _LANE * itemsize
    vmem_limit = int(min(48 << 20, max(32 << 20, 4 * tile_bytes + (8 << 20))))

    partial_sums = pl.pallas_call(
        kernel,
        out_shape=jax.ShapeDtypeStruct((N, S, _SUB, _LANE), jnp.float32),
        grid=(NB, S, KC),
        in_specs=[
            pl.BlockSpec((bs, rt, _LANE), in_map),
            pl.BlockSpec((bs, rt, _LANE), in_map),
        ],
        out_specs=pl.BlockSpec((bs, None, _SUB, _LANE), lambda i, s, k: (i, s, 0, 0)),
        compiler_params=pltpu.CompilerParams(
            dimension_semantics=("parallel", "parallel", "arbitrary"),
            vmem_limit_bytes=vmem_limit),
    )(p3, t3)

    sse = partial_sums.sum(axis=(1, 2, 3))          # (N,) per-sample SSE
    mse = sse / jnp.float32(D)
    return loss_weight * scale * jnp.mean(jnp.log(mse + 1e-8))


def _psnr_ref(pred, target, loss_weight=1.0, toY=False):
    """Pure-JAX reference matching the PyTorch module."""
    scale = 10.0 / np.log(10.0)
    if toY:
        coef = jnp.array([65.481, 128.553, 24.966], dtype=jnp.float32).reshape(1, 3, 1, 1)
        pred = ((pred.astype(jnp.float32) * coef).sum(axis=1, keepdims=True) + 16.0) / 255.0
        target = ((target.astype(jnp.float32) * coef).sum(axis=1, keepdims=True) + 16.0) / 255.0
    d = pred.astype(jnp.float32) - target.astype(jnp.float32)
    mse = jnp.mean(d * d, axis=(1, 2, 3))
    return loss_weight * scale * jnp.mean(jnp.log(mse + 1e-8))


if __name__ == "__main__":
    key = jax.random.PRNGKey(0)

    # Test 1: aligned NCHW (D a multiple of 1024) -> no host pad, batch-folded tile.
    k1, k2, key = jax.random.split(key, 3)
    N, C, H, W = 2, 4, 16, 16
    pred = jax.random.uniform(k1, (N, C, H, W), dtype=jnp.float32)
    target = jax.random.uniform(k2, (N, C, H, W), dtype=jnp.float32)
    loss = jax.block_until_ready(psnr_loss(pred, target))
    ref = _psnr_ref(pred, target)
    assert jnp.allclose(loss, ref, rtol=1e-5, atol=1e-6), (loss, ref)

    # Test 2: ragged D (not a multiple of 128) + toY path.
    k3, k4, key = jax.random.split(key, 3)
    pred2 = jax.random.uniform(k3, (2, 3, 7, 9), dtype=jnp.float32)
    target2 = jax.random.uniform(k4, (2, 3, 7, 9), dtype=jnp.float32)
    loss2 = jax.block_until_ready(psnr_loss(pred2, target2, loss_weight=0.5, toY=True))
    ref2 = _psnr_ref(pred2, target2, loss_weight=0.5, toY=True)
    assert jnp.allclose(loss2, ref2, rtol=1e-5, atol=1e-6), (loss2, ref2)

    # Test 3: force the chunked big-image path at a small size (exercises the
    # row-chunk grid axis, the in-kernel tail mask, and the S=2 chunk split).
    k5, k6, key = jax.random.split(key, 3)
    pred3 = jax.random.uniform(k5, (1, 3, 40, 40), dtype=jnp.float32)
    target3 = jax.random.uniform(k6, (1, 3, 40, 40), dtype=jnp.float32)
    loss3 = jax.block_until_ready(psnr_loss(pred3, target3, _force_max_rows=16))
    ref3 = _psnr_ref(pred3, target3)
    assert jnp.allclose(loss3, ref3, rtol=1e-5, atol=1e-6), (loss3, ref3)

    print("KERNEL_OK")
</pallas_src>

<mosaic_0001>
module attributes {stable_mosaic.version = 11 : i64} {
  func.func @_psnr_sse_kernel(%arg0: i32, %arg1: i32, %arg2: i32, %arg3: memref<2x8x128xf32, #tpu.memory_space<vmem>>, %arg4: memref<2x8x128xf32, #tpu.memory_space<vmem>>, %arg5: memref<2x1x8x128xf32, #tpu.memory_space<vmem>>) attributes {dimension_semantics = [#tpu.dimension_semantics<parallel>, #tpu.dimension_semantics<parallel>, #tpu.dimension_semantics<arbitrary>], iteration_bounds = array<i64: 1, 1, 1>, scalar_prefetch = 0 : i64, scratch_operands = 0 : i64, tpu.core_type = #tpu.core_type<tc>, window_params = [{transform_indices = @transform_0, window_bounds = array<i64: 2, 8, 128>}, {transform_indices = @transform_1, window_bounds = array<i64: 2, 8, 128>}, {transform_indices = @transform_2, window_bounds = array<i64: 2, 1, 8, 128>}]} {
    %c0_i32 = arith.constant 0 : i32
    %0 = arith.cmpi eq, %arg2, %c0_i32 : i32
    %1 = arith.extui %0 : i1 to i32
    %c0_i32_0 = arith.constant 0 : i32
    %2 = arith.cmpi ne, %1, %c0_i32_0 : i32
    scf.if %2 {
      %cst_14 = arith.constant 0.000000e+00 : f32
      %15 = vector.broadcast %cst_14 : f32 to vector<2x8x128xf32>
      %c0_15 = arith.constant 0 : index
      %c0_16 = arith.constant 0 : index
      %c0_17 = arith.constant 0 : index
      %c0_18 = arith.constant 0 : index
      %16 = vector.load %arg5[%c0_15, %c0_16, %c0_17, %c0_18] : memref<2x1x8x128xf32, #tpu.memory_space<vmem>>, vector<2x1x8x128xf32>
      %17 = vector.shape_cast %16 : vector<2x1x8x128xf32> to vector<2x8x128xf32>
      %18 = vector.shape_cast %15 : vector<2x8x128xf32> to vector<2x1x8x128xf32>
      tpu.vector_store %arg5[%c0_15, %c0_16, %c0_17, %c0_18], %18 {strides = array<i32>} : memref<2x1x8x128xf32, #tpu.memory_space<vmem>>, vector<2x1x8x128xf32>,
    } else {
    }
    %c0 = arith.constant 0 : index
    %c0_1 = arith.constant 0 : index
    %c0_2 = arith.constant 0 : index
    %3 = vector.load %arg3[%c0, %c0_1, %c0_2] : memref<2x8x128xf32, #tpu.memory_space<vmem>>, vector<2x8x128xf32>
    %c0_3 = arith.constant 0 : index
    %c0_4 = arith.constant 0 : index
    %c0_5 = arith.constant 0 : index
    %4 = vector.load %arg4[%c0_3, %c0_4, %c0_5] : memref<2x8x128xf32, #tpu.memory_space<vmem>>, vector<2x8x128xf32>
    %5 = arith.subf %3, %4 : vector<2x8x128xf32>
    %6 = arith.mulf %5, %5 : vector<2x8x128xf32>
    %c0_6 = arith.constant 0 : index
    %c0_7 = arith.constant 0 : index
    %c0_8 = arith.constant 0 : index
    %c0_9 = arith.constant 0 : index
    %7 = vector.load %arg5[%c0_6, %c0_7, %c0_8, %c0_9] : memref<2x1x8x128xf32, #tpu.memory_space<vmem>>, vector<2x1x8x128xf32>
    %8 = vector.shape_cast %7 : vector<2x1x8x128xf32> to vector<2x8x128xf32>
    %9 = vector.shape_cast %6 : vector<2x8x128xf32> to vector<2x1x8x128xf32>
    %cst = arith.constant dense<0.000000e+00> : vector<2x8x128xf32>
    %10 = vector.multi_reduction <add>, %9, %cst [1] : vector<2x1x8x128xf32> to vector<2x8x128xf32>
    %11 = arith.addf %8, %10 : vector<2x8x128xf32>
    %c0_10 = arith.constant 0 : index
    %c0_11 = arith.constant 0 : index
    %c0_12 = arith.constant 0 : index
    %c0_13 = arith.constant 0 : index
    %12 = vector.load %arg5[%c0_10, %c0_11, %c0_12, %c0_13] : memref<2x1x8x128xf32, #tpu.memory_space<vmem>>, vector<2x1x8x128xf32>
    %13 = vector.shape_cast %12 : vector<2x1x8x128xf32> to vector<2x8x128xf32>
    %14 = vector.shape_cast %11 : vector<2x8x128xf32> to vector<2x1x8x128xf32>
    tpu.vector_store %arg5[%c0_10, %c0_11, %c0_12, %c0_13], %14 {strides = array<i32>} : memref<2x1x8x128xf32, #tpu.memory_space<vmem>>, vector<2x1x8x128xf32>,
    return
  }
  func.func @transform_0(%arg0: i32, %arg1: i32, %arg2: i32) -> (i32, i32, i32) {
    %c1_i32 = arith.constant 1 : i32
    %0 = arith.muli %arg1, %c1_i32 : i32
    %1 = arith.addi %0, %arg2 : i32
    %c0_i32 = arith.constant 0 : i32
    %2 = arith.minsi %1, %c0_i32 : i32
    %c0_i32_0 = arith.constant 0 : i32
    %c0_i32_1 = arith.constant 0 : i32
    return %arg0, %2, %c0_i32_0 : i32, i32, i32
  }
  func.func @transform_1(%arg0: i32, %arg1: i32, %arg2: i32) -> (i32, i32, i32) {
    %c1_i32 = arith.constant 1 : i32
    %0 = arith.muli %arg1, %c1_i32 : i32
    %1 = arith.addi %0, %arg2 : i32
    %c0_i32 = arith.constant 0 : i32
    %2 = arith.minsi %1, %c0_i32 : i32
    %c0_i32_0 = arith.constant 0 : i32
    %c0_i32_1 = arith.constant 0 : i32
    return %arg0, %2, %c0_i32_0 : i32, i32, i32
  }
  func.func @transform_2(%arg0: i32, %arg1: i32, %arg2: i32) -> (i32, i32, i32, i32) {
    %c0_i32 = arith.constant 0 : i32
    %c0_i32_0 = arith.constant 0 : i32
    %c0_i32_1 = arith.constant 0 : i32
    return %arg0, %arg1, %c0_i32, %c0_i32_0 : i32, i32, i32, i32
  }
}

</mosaic_0001>

<llo_original>
// kernel: tpu_custom_call.1
$region0: #{tpu_custom_call.1}
  #allocation0 [shape = 'u32[]', space=smem, size = 0x4, offset = 0x4, fixed_abs, tag = 'smem constant byte address 0x4 - core index']
  #allocation1 [shape = 'u32[144,128]{1,0:T(1,128)}', space=vmem, size = 0x12000, scoped, tag = 'internal scratch']
  %s0 = inlined_call_operand.hbm [shape: f32[2,8,128], index: 0, kind: input, shape index: {}]
  %s1 = inlined_call_operand.hbm [shape: f32[2,8,128], index: 1, kind: input, shape index: {}]
  %s2 = inlined_call_operand.hbm [shape: f32[2,1,8,128], index: 2, kind: output, shape index: {}]
  %s3 = sld [smem:[#allocation0]]
  $region30: #{tpu_custom_call.1} parent=0
    _
  %s5 = ssub.s32 1, %s3
  %s6 = scalar_select 0, %s5, %s3
  $region1: #{tpu_custom_call.1} parent=0
    #allocation2 [shape = 'u8[8192]{0}', space=vmem, size = 0x2000, scoped, tag = 'input window, operand 0, single buffered']
    #allocation3 [shape = 's32[1]{0}', space=sflag, size = 0x4, scoped, tag = 'scoped memory for tpu_custom_call.1']
    #allocation4 [shape = 's32[1]{0}', space=sflag, size = 0x4, scoped, tag = 'scoped memory for tpu_custom_call.1']
    #allocation5 [shape = 'u8[8192]{0}', space=vmem, size = 0x2000, scoped, tag = 'input window, operand 1, single buffered']
    #allocation6 [shape = 's32[1]{0}', space=sflag, size = 0x4, scoped, tag = 'scoped memory for tpu_custom_call.1']
    #allocation7 [shape = 'u8[8192]{0}', space=vmem, size = 0x2000, scoped, tag = 'output window, operand 0, single buffered']
    %7 = vsyncpa [#allocation3], 0
    %8 = vsyncpa [#allocation6], 0
    %9 = vsyncpa [#allocation4], 0
    // Predicated region
    $region2: #{tpu_custom_call.1} parent=1 // pred_check
      _
    $region3: #{tpu_custom_call.1} parent=1 // pred_check_branch
      %11 = sbr.rel (0) target = $region5
    $region4: #{tpu_custom_call.1} parent=1 // pred_region
      %s12 = sadd.s32 0, 0
      %p13 = scmp.lt.s32.totalorder %s12, 0
      %s14 = scalar_select %p13, %s12, 0
      %s16 = ssub.s32 256, 256
      %17 = vsyncadd [#allocation3], %s16
      %s18 = smul.addr %s14, 128
      %s19 = scalar_lea.hbm %s0, %s18
      %s20 = sshll.u32 [#allocation2], 4
      %s21 = int_to_ptr.vmem [resolvable:$true] %s20
      %26 = dma.hbm_to_vmem [thread:$0]  %s19, 256, %s21, [#allocation3], 128, 128, 8
    $region5: #{tpu_custom_call.1} parent=1 // pred_fallthru
      _
    // Predicated region
    $region6: #{tpu_custom_call.1} parent=1 // pred_check
      _
    $region7: #{tpu_custom_call.1} parent=1 // pred_check_branch
      %28 = sbr.rel (0) target = $region9
    $region8: #{tpu_custom_call.1} parent=1 // pred_region
      %s29 = sadd.s32 0, 0
      %p30 = scmp.lt.s32.totalorder %s29, 0
      %s31 = scalar_select %p30, %s29, 0
      %s33 = ssub.s32 256, 256
      %34 = vsyncadd [#allocation6], %s33
      %s35 = smul.addr %s31, 128
      %s36 = scalar_lea.hbm %s1, %s35
      %s37 = sshll.u32 [#allocation5], 4
      %s38 = int_to_ptr.vmem [resolvable:$true] %s37
      %43 = dma.hbm_to_vmem [thread:$0]  %s36, 256, %s38, [#allocation6], 128, 128, 8
    $region9: #{tpu_custom_call.1} parent=1 // pred_fallthru
      _
    // Predicated region
    $region10: #{tpu_custom_call.1} parent=1 // pred_check
      _
    $region11: #{tpu_custom_call.1} parent=1 // pred_check_branch
      %45 = sbr.rel (0) target = $region13
    $region12: #{tpu_custom_call.1} parent=1 // pred_region
      %46 = dma.done [#allocation3], 256
    $region13: #{tpu_custom_call.1} parent=1 // pred_fallthru
      _
    // Predicated region
    $region14: #{tpu_custom_call.1} parent=1 // pred_check
      _
    $region15: #{tpu_custom_call.1} parent=1 // pred_check_branch
      %48 = sbr.rel (0) target = $region17
    $region16: #{tpu_custom_call.1} parent=1 // pred_region
      %49 = dma.done [#allocation6], 256
    $region17: #{tpu_custom_call.1} parent=1 // pred_fallthru
      _
    %s50 = sadd.s32 0, 0
    %p51 = scmp.lt.s32.totalorder %s50, 0
    %s52 = scalar_select %p51, %s50, 0
    %s53 = sadd.s32 0, 0
    %p54 = scmp.lt.s32.totalorder %s53, 0
    %s55 = scalar_select %p54, %s53, 0
    %p56 = scmp.eq.s32.totalorder 0, 0
    // Predicated region
    $region18: #{tpu_custom_call.1} parent=1 // pred_check
      %p57 = pneg %p56
    $region19: #{tpu_custom_call.1} parent=1 // pred_check_branch
      %59 = sbr.rel (%p57) target = $region21
    $region20: #{tpu_custom_call.1} parent=1 // pred_region
      %60 = vst [vmem:[#allocation7] sm:$0xff] 0.0
      %61 = vst [vmem:[#allocation7 + $0x8] sm:$0xff] 0.0
    $region21: #{tpu_custom_call.1} parent=1 // pred_fallthru
      _
    %v62 = vld [vmem:[#allocation2] sm:$0xff]
    %v63 = vld [vmem:[#allocation2 + $0x8] sm:$0xff]
    %v64 = vld [vmem:[#allocation5] sm:$0xff]
    %v65 = vld [vmem:[#allocation5 + $0x8] sm:$0xff]
    %v66 = vsub.f32 %v62, %v64
    %v67 = vsub.f32 %v63, %v65
    %v68 = vmul.f32 %v66, %v66
    %v69 = vmul.f32 %v67, %v67
    %v70 = vld [vmem:[#allocation7] sm:$0xff]
    %v71 = vld [vmem:[#allocation7 + $0x8] sm:$0xff]
    %v72 = vadd.f32 %v68, 0.0
    %v73 = vadd.f32 %v69, 0.0
    %v74 = vadd.f32 %v70, %v72
    %v75 = vadd.f32 %v71, %v73
    %76 = vst [vmem:[#allocation7] sm:$0xff] %v74
    %77 = vst [vmem:[#allocation7 + $0x8] sm:$0xff] %v75
    // Predicated region
    $region22: #{tpu_custom_call.1} parent=1 // pred_check
      _
    $region23: #{tpu_custom_call.1} parent=1 // pred_check_branch
      %79 = sbr.rel (0) target = $region25
    $region24: #{tpu_custom_call.1} parent=1 // pred_region
      %s81 = ssub.s32 256, 256
      %82 = vsyncadd [#allocation4], %s81
      %s83 = sshll.u32 [#allocation7], 4
      %s84 = int_to_ptr.vmem [resolvable:$true] %s83
      %89 = dma.vmem_to_hbm [thread:$0]  %s84, 256, %s2, [#allocation4], 128, 128, 8
    $region25: #{tpu_custom_call.1} parent=1 // pred_fallthru
      _
    // Predicated region
    $region26: #{tpu_custom_call.1} parent=1 // pred_check
      _
    $region27: #{tpu_custom_call.1} parent=1 // pred_check_branch
      %91 = sbr.rel (0) target = $region29
    $region28: #{tpu_custom_call.1} parent=1 // pred_region
      %92 = dma.done [#allocation4], 256
    $region29: #{tpu_custom_call.1} parent=1 // pred_fallthru
      _
    %93 = vsyncpa [#allocation3], 1
    %94 = vsyncpa [#allocation6], 1
    %95 = vsyncpa [#allocation4], 1

</llo_original>
